<compile_context>
chip_gen: v5e
topology: v5e:2x2
jax: 0.10.0
libtpu: 0.0.40
codegen_flags: <defaults>
</compile_context>

<pallas_src>
import math
import functools

import jax
import jax.numpy as jnp
from jax.experimental import pallas as pl
from jax.experimental.pallas import tpu as pltpu


# ---------------------------------------------------------------------------
# Kernels
# ---------------------------------------------------------------------------

def _noisy_linear_train_kernel(x_ref, wmu_ref, wsig_ref, eps_in_ref, eps_out_ref,
                               bias_ref, o_ref, *scratch, mxu_dtype, out_is_f32):
    """Training: y = x@Wmu^T + eps_out*((x*eps_in)@Wsig^T) + (b_mu + b_sig*eps_out).

    Weights arrive pre-transposed as (tk, tn) tiles, so both matmuls are plain
    row-major contractions on the MXU. eps_in is a (1, tk) row (sublane
    broadcast, cheap); eps_out is a (1, tn) row applied only at finalize.
    """
    k = pl.program_id(2)

    if out_is_f32:
        (acc_sig,) = scratch
        acc_mu = o_ref          # f32 output block is k-resident -> use it as the mu accumulator
    else:
        acc_mu, acc_sig = scratch

    @pl.when(k == 0)
    def _init():
        acc_mu[...] = jnp.zeros_like(acc_mu)
        acc_sig[...] = jnp.zeros_like(acc_sig)

    x = x_ref[...]

    # Mu path: bf16 operands, f32 accumulation.
    acc_mu[...] += jnp.dot(x.astype(mxu_dtype), wmu_ref[...].astype(mxu_dtype),
                           preferred_element_type=jnp.float32)

    # Sigma path: scale x columns by eps_in in f32 (VPU, v5e-safe: no bf16 VALU
    # on v5e), then feed the MXU in bf16.
    xs = x.astype(jnp.float32) * eps_in_ref[...].astype(jnp.float32)
    acc_sig[...] += jnp.dot(xs.astype(mxu_dtype), wsig_ref[...].astype(mxu_dtype),
                            preferred_element_type=jnp.float32)

    @pl.when(k == pl.num_programs(2) - 1)
    def _finalize():
        eps_out = eps_out_ref[...].astype(jnp.float32)   # (1, tn)
        bias = bias_ref[...].astype(jnp.float32)         # (1, tn), == b_mu + b_sigma*eps_out
        y = acc_mu[...] + eps_out * acc_sig[...] + bias
        o_ref[...] = y.astype(o_ref.dtype)


def _noisy_linear_eval_kernel(x_ref, wmu_ref, bias_ref, o_ref, *scratch,
                              mxu_dtype, out_is_f32):
    """Eval: y = x @ Wmu^T + b_mu. No sigma / epsilon HBM traffic."""
    k = pl.program_id(2)
    acc = o_ref if out_is_f32 else scratch[0]

    @pl.when(k == 0)
    def _init():
        acc[...] = jnp.zeros_like(acc)

    acc[...] += jnp.dot(x_ref[...].astype(mxu_dtype), wmu_ref[...].astype(mxu_dtype),
                        preferred_element_type=jnp.float32)

    @pl.when(k == pl.num_programs(2) - 1)
    def _finalize():
        o_ref[...] = (acc[...] + bias_ref[...].astype(jnp.float32)).astype(o_ref.dtype)


# ---------------------------------------------------------------------------
# Wrapper
# ---------------------------------------------------------------------------

def _round_up(x, m):
    return ((x + m - 1) // m) * m


def _pick_tile(dim_p, max_tile, granule):
    """Largest multiple of `granule` that is <= max_tile and divides dim_p."""
    t = max(granule, (min(max_tile, dim_p) // granule) * granule)
    while dim_p % t != 0:
        t -= granule
    return t


def noisy_linear_forward(x, params, *, out_features, training=True,
                         block_m=1024, block_n=512, block_k=512,
                         mxu_dtype=jnp.bfloat16):
    """Pallas TPU NoisyLinear forward.

    x:      (B, in_features), unpadded.
    params: dict from init_noisy_linear / reset_noise (weights pre-padded,
            pre-transposed, bf16 by default — never padded per call).
    """
    wmu_t = params["wmu_t"]                    # (in_p, out_p), param_dtype
    in_p, out_p = wmu_t.shape
    B, in_f = x.shape
    assert in_f <= in_p and out_features <= out_p
    out_dtype = x.dtype
    out_is_f32 = (out_dtype == jnp.float32)

    # --- tiling -----------------------------------------------------------
    # M: as few, minimally padded tiles as possible — weights are re-streamed
    # from HBM once per M tile, and round_up(B, tm) padding wastes compute.
    B_p8 = _round_up(B, 8)
    n_m = -(-B_p8 // block_m)
    tm = _round_up(-(-B_p8 // n_m), 8)
    B_p = tm * n_m
    tn = _pick_tile(out_p, block_n, 128)
    tk = _pick_tile(in_p, block_k, 128)
    # v7x megacore: make sure at least 2 tiles exist on a parallel axis.
    while (B_p // tm) * (out_p // tn) < 2 and tn % 256 == 0:
        tn //= 2

    grid = (B_p // tm, out_p // tn, in_p // tk)

    # Only x (and O(out)/O(in) vectors) are padded per call; weights were
    # padded once at init.
    x_p = jnp.pad(x, ((0, B_p - B), (0, in_p - in_f)))

    x_spec = pl.BlockSpec((tm, tk), lambda i, j, k: (i, k))
    wt_spec = pl.BlockSpec((tk, tn), lambda i, j, k: (k, j))
    row_n_spec = pl.BlockSpec((1, tn), lambda i, j, k: (0, j))   # k-invariant
    row_k_spec = pl.BlockSpec((1, tk), lambda i, j, k: (0, k))
    o_spec = pl.BlockSpec((tm, tn), lambda i, j, k: (i, j))

    n_w = 2 if training else 1
    n_scratch = (1 if training else 0) + (0 if out_is_f32 else 1)
    est = (2 * tm * tk * jnp.dtype(x.dtype).itemsize        # x, double-buffered
           + n_w * 2 * tk * tn * jnp.dtype(wmu_t.dtype).itemsize
           + 2 * tm * tn * jnp.dtype(out_dtype).itemsize    # out, double-buffered
           + n_scratch * tm * tn * 4
           + 8 * (tn + tk) * 4)                              # rows (negligible)
    # Headroom, but capped so a config tuned on v6e still fits v7x's 64 MiB VMEM.
    vmem_limit = int(min(max(2 * est, 32 * 2 ** 20), 48 * 2 ** 20))

    compiler_params = pltpu.CompilerParams(
        dimension_semantics=("parallel", "parallel", "arbitrary"),
        vmem_limit_bytes=vmem_limit)
    out_shape = jax.ShapeDtypeStruct((B_p, out_p), out_dtype)
    scratch = [pltpu.VMEM((tm, tn), jnp.float32)] * n_scratch

    if training:
        # Effective bias precomputed once per call (O(out) vector op).
        bias_eff = (params["bias_mu"] + params["bias_sigma"] * params["eps_out"]
                    ).reshape(1, out_p).astype(jnp.float32)
        eps_in_row = params["eps_in"].reshape(1, in_p).astype(jnp.float32)
        eps_out_row = params["eps_out"].reshape(1, out_p).astype(jnp.float32)
        kernel = functools.partial(_noisy_linear_train_kernel,
                                   mxu_dtype=mxu_dtype, out_is_f32=out_is_f32)
        y_p = pl.pallas_call(
            kernel,
            out_shape=out_shape,
            grid_spec=pltpu.PrefetchScalarGridSpec(
                num_scalar_prefetch=0,
                grid=grid,
                in_specs=[x_spec, wt_spec, wt_spec, row_k_spec, row_n_spec,
                          row_n_spec],
                out_specs=o_spec,
                scratch_shapes=scratch),
            compiler_params=compiler_params,
        )(x_p, wmu_t, params["wsig_t"], eps_in_row, eps_out_row, bias_eff)
    else:
        bias_row = params["bias_mu"].reshape(1, out_p).astype(jnp.float32)
        kernel = functools.partial(_noisy_linear_eval_kernel,
                                   mxu_dtype=mxu_dtype, out_is_f32=out_is_f32)
        y_p = pl.pallas_call(
            kernel,
            out_shape=out_shape,
            grid_spec=pltpu.PrefetchScalarGridSpec(
                num_scalar_prefetch=0,
                grid=grid,
                in_specs=[x_spec, wt_spec, row_n_spec],
                out_specs=o_spec,
                scratch_shapes=scratch),
            compiler_params=compiler_params,
        )(x_p, wmu_t, bias_row)

    return y_p[:B, :out_features]


# ---------------------------------------------------------------------------
# Parameter / noise initialization (mirrors NoisyLinear.__init__ semantics).
# Weights are padded/transposed/cast ONCE here, not per forward call.
# ---------------------------------------------------------------------------

def _scale_noise(key, size):
    """Factorized Gaussian noise: sign(x) * sqrt(|x|)."""
    x = jax.random.normal(key, (size,), dtype=jnp.float32)
    return jnp.sign(x) * jnp.sqrt(jnp.abs(x))


def reset_noise(params, key, in_features, out_features):
    in_p, out_p = params["wmu_t"].shape
    k_in, k_out = jax.random.split(key)
    eps_in = _scale_noise(k_in, in_features)
    eps_out = _scale_noise(k_out, out_features)
    new = dict(params)
    new["eps_in"] = jnp.pad(eps_in, (0, in_p - in_features))      # (in_p,)  f32
    new["eps_out"] = jnp.pad(eps_out, (0, out_p - out_features))  # (out_p,) f32
    return new


def init_noisy_linear(key, in_features, out_features, std_init=0.5,
                      param_dtype=jnp.bfloat16):
    k_wmu, k_bmu, k_noise = jax.random.split(key, 3)
    mu_range = 1.0 / math.sqrt(in_features)

    weight_mu = jax.random.uniform(
        k_wmu, (out_features, in_features), jnp.float32, -mu_range, mu_range)
    weight_sigma = jnp.full((out_features, in_features),
                            std_init / math.sqrt(in_features), jnp.float32)
    bias_mu = jax.random.uniform(
        k_bmu, (out_features,), jnp.float32, -mu_range, mu_range)
    bias_sigma = jnp.full((out_features,),
                          std_init / math.sqrt(out_features), jnp.float32)

    in_p = _round_up(in_features, 128)
    out_p = _round_up(out_features, 128)

    def _prep_weight(w):  # (out, in) -> padded, transposed (in_p, out_p), param_dtype
        wp = jnp.pad(w, ((0, out_p - out_features), (0, in_p - in_features)))
        return jnp.asarray(wp.T, dtype=param_dtype)

    params = dict(
        wmu_t=_prep_weight(weight_mu),
        wsig_t=_prep_weight(weight_sigma),
        bias_mu=jnp.pad(bias_mu, (0, out_p - out_features)),       # f32 (out_p,)
        bias_sigma=jnp.pad(bias_sigma, (0, out_p - out_features)), # f32 (out_p,)
    )
    return reset_noise(params, k_noise, in_features, out_features)


# ---------------------------------------------------------------------------
# Self-test
# ---------------------------------------------------------------------------

def _run_case(key, batch, in_features, out_features, x_dtype, tol):
    k_p, k_n, k_x = jax.random.split(key, 3)
    params = init_noisy_linear(k_p, in_features, out_features, std_init=0.5)
    params = reset_noise(params, k_n, in_features, out_features)
    x = jax.random.normal(k_x, (batch, in_features), jnp.float32).astype(x_dtype)

    fwd_train = jax.jit(functools.partial(
        noisy_linear_forward, out_features=out_features, training=True))
    fwd_eval = jax.jit(functools.partial(
        noisy_linear_forward, out_features=out_features, training=False))

    y_train = fwd_train(x, params)
    y_eval = fwd_eval(x, params)
    jax.block_until_ready((y_train, y_eval))

    # f32 reference built from the (bf16-stored) parameters.
    wmu = params["wmu_t"].astype(jnp.float32).T[:out_features, :in_features]
    wsig = params["wsig_t"].astype(jnp.float32).T[:out_features, :in_features]
    bmu = params["bias_mu"][:out_features]
    bsig = params["bias_sigma"][:out_features]
    eps_in = params["eps_in"][:in_features]
    eps_out = params["eps_out"][:out_features]
    xf = x.astype(jnp.float32)

    w = wmu + wsig * jnp.outer(eps_out, eps_in)
    b = bmu + bsig * eps_out
    ref_train = jnp.dot(xf, w.T, precision=jax.lax.Precision.HIGHEST) + b
    ref_eval = jnp.dot(xf, wmu.T, precision=jax.lax.Precision.HIGHEST) + bmu

    assert y_train.shape == (batch, out_features)
    assert y_eval.shape == (batch, out_features)
    err_t = float(jnp.max(jnp.abs(y_train.astype(jnp.float32) - ref_train)))
    err_e = float(jnp.max(jnp.abs(y_eval.astype(jnp.float32) - ref_eval)))
    assert jnp.allclose(y_train.astype(jnp.float32), ref_train,
                        atol=tol, rtol=tol), ("train", err_t)
    assert jnp.allclose(y_eval.astype(jnp.float32), ref_eval,
                        atol=tol, rtol=tol), ("eval", err_e)


if __name__ == "__main__":
    key = jax.random.PRNGKey(0)
    k1, k2 = jax.random.split(key)

    # Case 1: tiny, deliberately non-aligned shapes (exercise padding + slice),
    # f32 activations (output block used as accumulator, single grid step).
    _run_case(k1, batch=6, in_features=40, out_features=72,
              x_dtype=jnp.float32, tol=2e-2)

    # Case 2: larger K so the reduction grid axis has several steps
    # (init/finalize via pl.when), bf16 activations (scratch accumulators).
    _run_case(k2, batch=16, in_features=640, out_features=384,
              x_dtype=jnp.bfloat16, tol=3e-2)

    print("KERNEL_OK")
</pallas_src>

<mosaic_0001>
module attributes {stable_mosaic.version = 11 : i64} {
  func.func @_noisy_linear_train_kernel(%arg0: i32, %arg1: i32, %arg2: i32, %arg3: memref<8x128xf32, #tpu.memory_space<vmem>>, %arg4: memref<128x128xbf16, #tpu.memory_space<vmem>>, %arg5: memref<128x128xbf16, #tpu.memory_space<vmem>>, %arg6: memref<1x128xf32, #tpu.memory_space<vmem>>, %arg7: memref<1x128xf32, #tpu.memory_space<vmem>>, %arg8: memref<1x128xf32, #tpu.memory_space<vmem>>, %arg9: memref<8x128xf32, #tpu.memory_space<vmem>>, %arg10: memref<8x128xf32, #tpu.memory_space<vmem>>) attributes {dimension_semantics = [#tpu.dimension_semantics<parallel>, #tpu.dimension_semantics<parallel>, #tpu.dimension_semantics<arbitrary>], iteration_bounds = array<i64: 1, 1, 1>, scalar_prefetch = 0 : i64, scratch_operands = 1 : i64, tpu.core_type = #tpu.core_type<tc>, window_params = [{transform_indices = @transform_0, window_bounds = array<i64: 8, 128>}, {transform_indices = @transform_1, window_bounds = array<i64: 128, 128>}, {transform_indices = @transform_2, window_bounds = array<i64: 128, 128>}, {transform_indices = @transform_3, window_bounds = array<i64: 1, 128>}, {transform_indices = @transform_4, window_bounds = array<i64: 1, 128>}, {transform_indices = @transform_5, window_bounds = array<i64: 1, 128>}, {transform_indices = @transform_6, window_bounds = array<i64: 8, 128>}]} {
    %c0_i32 = arith.constant 0 : i32
    %0 = arith.cmpi eq, %arg2, %c0_i32 : i32
    %1 = arith.extui %0 : i1 to i32
    %c0_i32_0 = arith.constant 0 : i32
    %2 = arith.cmpi ne, %1, %c0_i32_0 : i32
    scf.if %2 {
      %cst_19 = arith.constant 0.000000e+00 : f32
      %22 = vector.broadcast %cst_19 : f32 to vector<8x128xf32>
      %c0_20 = arith.constant 0 : index
      %c0_21 = arith.constant 0 : index
      %23 = vector.load %arg9[%c0_20, %c0_21] : memref<8x128xf32, #tpu.memory_space<vmem>>, vector<8x128xf32>
      tpu.vector_store %arg9[%c0_20, %c0_21], %22 {strides = array<i32>} : memref<8x128xf32, #tpu.memory_space<vmem>>, vector<8x128xf32>,
      %cst_22 = arith.constant 0.000000e+00 : f32
      %24 = vector.broadcast %cst_22 : f32 to vector<8x128xf32>
      %c0_23 = arith.constant 0 : index
      %c0_24 = arith.constant 0 : index
      %25 = vector.load %arg10[%c0_23, %c0_24] : memref<8x128xf32, #tpu.memory_space<vmem>>, vector<8x128xf32>
      tpu.vector_store %arg10[%c0_23, %c0_24], %24 {strides = array<i32>} : memref<8x128xf32, #tpu.memory_space<vmem>>, vector<8x128xf32>,
    } else {
    }
    %c0 = arith.constant 0 : index
    %c0_1 = arith.constant 0 : index
    %3 = vector.load %arg3[%c0, %c0_1] : memref<8x128xf32, #tpu.memory_space<vmem>>, vector<8x128xf32>
    %c0_2 = arith.constant 0 : index
    %c0_3 = arith.constant 0 : index
    %4 = vector.load %arg9[%c0_2, %c0_3] : memref<8x128xf32, #tpu.memory_space<vmem>>, vector<8x128xf32>
    %5 = arith.truncf %3 : vector<8x128xf32> to vector<8x128xbf16>
    %c0_4 = arith.constant 0 : index
    %c0_5 = arith.constant 0 : index
    %6 = vector.load %arg4[%c0_4, %c0_5] : memref<128x128xbf16, #tpu.memory_space<vmem>>, vector<128x128xbf16>
    %cst = arith.constant dense<0.000000e+00> : vector<8x128xf32>
    %7 = tpu.matmul %5, %6, %cst {dimension_numbers = #tpu.dot_dimension_numbers<[1], [0], [0], [1], [0, 0, 1, 1], [], []>} : vector<8x128xbf16>, vector<128x128xbf16>, vector<8x128xf32> -> vector<8x128xf32>
    %8 = arith.addf %4, %7 : vector<8x128xf32>
    %c0_6 = arith.constant 0 : index
    %c0_7 = arith.constant 0 : index
    %9 = vector.load %arg9[%c0_6, %c0_7] : memref<8x128xf32, #tpu.memory_space<vmem>>, vector<8x128xf32>
    tpu.vector_store %arg9[%c0_6, %c0_7], %8 {strides = array<i32>} : memref<8x128xf32, #tpu.memory_space<vmem>>, vector<8x128xf32>,
    %c0_8 = arith.constant 0 : index
    %c0_9 = arith.constant 0 : index
    %10 = vector.load %arg6[%c0_8, %c0_9] : memref<1x128xf32, #tpu.memory_space<vmem>>, vector<1x128xf32>
    %11 = vector.broadcast %10 : vector<1x128xf32> to vector<8x128xf32>
    %12 = arith.mulf %3, %11 : vector<8x128xf32>
    %c0_10 = arith.constant 0 : index
    %c0_11 = arith.constant 0 : index
    %13 = vector.load %arg10[%c0_10, %c0_11] : memref<8x128xf32, #tpu.memory_space<vmem>>, vector<8x128xf32>
    %14 = arith.truncf %12 : vector<8x128xf32> to vector<8x128xbf16>
    %c0_12 = arith.constant 0 : index
    %c0_13 = arith.constant 0 : index
    %15 = vector.load %arg5[%c0_12, %c0_13] : memref<128x128xbf16, #tpu.memory_space<vmem>>, vector<128x128xbf16>
    %cst_14 = arith.constant dense<0.000000e+00> : vector<8x128xf32>
    %16 = tpu.matmul %14, %15, %cst_14 {dimension_numbers = #tpu.dot_dimension_numbers<[1], [0], [0], [1], [0, 0, 1, 1], [], []>} : vector<8x128xbf16>, vector<128x128xbf16>, vector<8x128xf32> -> vector<8x128xf32>
    %17 = arith.addf %13, %16 : vector<8x128xf32>
    %c0_15 = arith.constant 0 : index
    %c0_16 = arith.constant 0 : index
    %18 = vector.load %arg10[%c0_15, %c0_16] : memref<8x128xf32, #tpu.memory_space<vmem>>, vector<8x128xf32>
    tpu.vector_store %arg10[%c0_15, %c0_16], %17 {strides = array<i32>} : memref<8x128xf32, #tpu.memory_space<vmem>>, vector<8x128xf32>,
    %c0_i32_17 = arith.constant 0 : i32
    %19 = arith.cmpi eq, %arg2, %c0_i32_17 : i32
    %20 = arith.extui %19 : i1 to i32
    %c0_i32_18 = arith.constant 0 : i32
    %21 = arith.cmpi ne, %20, %c0_i32_18 : i32
    scf.if %21 {
      %c0_19 = arith.constant 0 : index
      %c0_20 = arith.constant 0 : index
      %22 = vector.load %arg7[%c0_19, %c0_20] : memref<1x128xf32, #tpu.memory_space<vmem>>, vector<1x128xf32>
      %c0_21 = arith.constant 0 : index
      %c0_22 = arith.constant 0 : index
      %23 = vector.load %arg8[%c0_21, %c0_22] : memref<1x128xf32, #tpu.memory_space<vmem>>, vector<1x128xf32>
      %c0_23 = arith.constant 0 : index
      %c0_24 = arith.constant 0 : index
      %24 = vector.load %arg9[%c0_23, %c0_24] : memref<8x128xf32, #tpu.memory_space<vmem>>, vector<8x128xf32>
      %c0_25 = arith.constant 0 : index
      %c0_26 = arith.constant 0 : index
      %25 = vector.load %arg10[%c0_25, %c0_26] : memref<8x128xf32, #tpu.memory_space<vmem>>, vector<8x128xf32>
      %26 = vector.broadcast %22 : vector<1x128xf32> to vector<8x128xf32>
      %27 = arith.mulf %26, %25 : vector<8x128xf32>
      %28 = arith.addf %24, %27 : vector<8x128xf32>
      %29 = vector.broadcast %23 : vector<1x128xf32> to vector<8x128xf32>
      %30 = arith.addf %28, %29 : vector<8x128xf32>
      %c0_27 = arith.constant 0 : index
      %c0_28 = arith.constant 0 : index
      %31 = vector.load %arg9[%c0_27, %c0_28] : memref<8x128xf32, #tpu.memory_space<vmem>>, vector<8x128xf32>
      tpu.vector_store %arg9[%c0_27, %c0_28], %30 {strides = array<i32>} : memref<8x128xf32, #tpu.memory_space<vmem>>, vector<8x128xf32>,
    } else {
    }
    return
  }
  func.func @transform_0(%arg0: i32, %arg1: i32, %arg2: i32) -> (i32, i32) {
    %c0_i32 = arith.constant 0 : i32
    return %arg0, %arg2 : i32, i32
  }
  func.func @transform_1(%arg0: i32, %arg1: i32, %arg2: i32) -> (i32, i32) {
    %c0_i32 = arith.constant 0 : i32
    return %arg2, %arg1 : i32, i32
  }
  func.func @transform_2(%arg0: i32, %arg1: i32, %arg2: i32) -> (i32, i32) {
    %c0_i32 = arith.constant 0 : i32
    return %arg2, %arg1 : i32, i32
  }
  func.func @transform_3(%arg0: i32, %arg1: i32, %arg2: i32) -> (i32, i32) {
    %c0_i32 = arith.constant 0 : i32
    %c0_i32_0 = arith.constant 0 : i32
    return %c0_i32, %arg2 : i32, i32
  }
  func.func @transform_4(%arg0: i32, %arg1: i32, %arg2: i32) -> (i32, i32) {
    %c0_i32 = arith.constant 0 : i32
    %c0_i32_0 = arith.constant 0 : i32
    return %c0_i32, %arg1 : i32, i32
  }
  func.func @transform_5(%arg0: i32, %arg1: i32, %arg2: i32) -> (i32, i32) {
    %c0_i32 = arith.constant 0 : i32
    %c0_i32_0 = arith.constant 0 : i32
    return %c0_i32, %arg1 : i32, i32
  }
  func.func @transform_6(%arg0: i32, %arg1: i32, %arg2: i32) -> (i32, i32) {
    %c0_i32 = arith.constant 0 : i32
    return %arg0, %arg1 : i32, i32
  }
}

</mosaic_0001>

<llo_original>
// kernel: noisy_linear_forward.1
$region0: #{noisy_linear_forward.1}
  #allocation0 [shape = 'u32[]', space=smem, size = 0x4, offset = 0x4, fixed_abs, tag = 'smem constant byte address 0x4 - core index']
  #allocation1 [shape = 'u32[72,128]{1,0:T(1,128)}', space=vmem, size = 0x9000, scoped, tag = 'internal scratch']
  #allocation2 [shape = 'f32[8,128]{1,0:T(8,128)}', space=vmem, size = 0x1000, scoped, tag = 'scratch operand']
  %s0 = inlined_call_operand.vmem [shape: f32[8,128], index: 0, kind: input, shape index: {}]
  %s1 = inlined_call_operand.hbm [shape: bf16[128,128], index: 1, kind: input, shape index: {}]
  %s2 = inlined_call_operand.hbm [shape: bf16[128,128], index: 2, kind: input, shape index: {}]
  %s3 = inlined_call_operand.vmem [shape: f32[1,128], index: 3, kind: input, shape index: {}]
  %s4 = inlined_call_operand.vmem [shape: f32[1,128], index: 4, kind: input, shape index: {}]
  %s5 = inlined_call_operand.vmem [shape: f32[1,128], index: 5, kind: input, shape index: {}]
  %s6 = inlined_call_operand.hbm [shape: f32[8,128], index: 6, kind: output, shape index: {}]
  %s7 = sld [smem:[#allocation0]]
  $region50: #{noisy_linear_forward.1} parent=0
    _
  %s9 = ssub.s32 1, %s7
  %s10 = scalar_select 0, %s9, %s7
  $region1: #{noisy_linear_forward.1} parent=0
    #allocation3 [shape = 'u8[32768]{0}', space=vmem, size = 0x8000, scoped, tag = 'input window, operand 1, single buffered']
    #allocation4 [shape = 's32[1]{0}', space=sflag, size = 0x4, scoped, tag = 'scoped memory for noisy_linear_forward.1']
    #allocation5 [shape = 's32[1]{0}', space=sflag, size = 0x4, scoped, tag = 'scoped memory for noisy_linear_forward.1']
    #allocation6 [shape = 'u8[32768]{0}', space=vmem, size = 0x8000, scoped, tag = 'input window, operand 2, single buffered']
    #allocation7 [shape = 's32[1]{0}', space=sflag, size = 0x4, scoped, tag = 'scoped memory for noisy_linear_forward.1']
    #allocation8 [shape = 'u8[4096]{0}', space=vmem, size = 0x1000, scoped, tag = 'output window, operand 0, single buffered']
    %11 = vsyncpa [#allocation4], 0
    %12 = vsyncpa [#allocation7], 0
    %13 = vsyncpa [#allocation5], 0
    // Predicated region
    $region2: #{noisy_linear_forward.1} parent=1 // pred_check
      _
    $region3: #{noisy_linear_forward.1} parent=1 // pred_check_branch
      %15 = sbr.rel (0) target = $region5
    $region4: #{noisy_linear_forward.1} parent=1 // pred_region
      _
    $region5: #{noisy_linear_forward.1} parent=1 // pred_fallthru
      _
    // Predicated region
    $region6: #{noisy_linear_forward.1} parent=1 // pred_check
      _
    $region7: #{noisy_linear_forward.1} parent=1 // pred_check_branch
      %17 = sbr.rel (0) target = $region9
    $region8: #{noisy_linear_forward.1} parent=1 // pred_region
      %19 = vsyncadd [#allocation4], 0
      %s20 = sshll.u32 %s1, 4
      %s21 = int_to_ptr.hbm [resolvable:$true] %s20
      %s22 = sshll.u32 [#allocation3], 4
      %s23 = int_to_ptr.vmem [resolvable:$true] %s22
      %28 = dma.hbm_to_vmem [thread:$0]  %s21, 1024, %s23, [#allocation4], 64, 64, 4
    $region9: #{noisy_linear_forward.1} parent=1 // pred_fallthru
      _
    // Predicated region
    $region10: #{noisy_linear_forward.1} parent=1 // pred_check
      _
    $region11: #{noisy_linear_forward.1} parent=1 // pred_check_branch
      %30 = sbr.rel (0) target = $region13
    $region12: #{noisy_linear_forward.1} parent=1 // pred_region
      %32 = vsyncadd [#allocation7], 0
      %s33 = sshll.u32 %s2, 4
      %s34 = int_to_ptr.hbm [resolvable:$true] %s33
      %s35 = sshll.u32 [#allocation6], 4
      %s36 = int_to_ptr.vmem [resolvable:$true] %s35
      %41 = dma.hbm_to_vmem [thread:$0]  %s34, 1024, %s36, [#allocation7], 64, 64, 4
    $region13: #{noisy_linear_forward.1} parent=1 // pred_fallthru
      _
    // Predicated region
    $region14: #{noisy_linear_forward.1} parent=1 // pred_check
      _
    $region15: #{noisy_linear_forward.1} parent=1 // pred_check_branch
      %43 = sbr.rel (0) target = $region17
    $region16: #{noisy_linear_forward.1} parent=1 // pred_region
      _
    $region17: #{noisy_linear_forward.1} parent=1 // pred_fallthru
      _
    // Predicated region
    $region18: #{noisy_linear_forward.1} parent=1 // pred_check
      _
    $region19: #{noisy_linear_forward.1} parent=1 // pred_check_branch
      %45 = sbr.rel (0) target = $region21
    $region20: #{noisy_linear_forward.1} parent=1 // pred_region
      _
    $region21: #{noisy_linear_forward.1} parent=1 // pred_fallthru
      _
    // Predicated region
    $region22: #{noisy_linear_forward.1} parent=1 // pred_check
      _
    $region23: #{noisy_linear_forward.1} parent=1 // pred_check_branch
      %47 = sbr.rel (0) target = $region25
    $region24: #{noisy_linear_forward.1} parent=1 // pred_region
      _
    $region25: #{noisy_linear_forward.1} parent=1 // pred_fallthru
      _
    // Predicated region
    $region26: #{noisy_linear_forward.1} parent=1 // pred_check
      _
    $region27: #{noisy_linear_forward.1} parent=1 // pred_check_branch
      %49 = sbr.rel (0) target = $region29
    $region28: #{noisy_linear_forward.1} parent=1 // pred_region
      %51 = dma.done [#allocation4], 1024
    $region29: #{noisy_linear_forward.1} parent=1 // pred_fallthru
      _
    // Predicated region
    $region30: #{noisy_linear_forward.1} parent=1 // pred_check
      _
    $region31: #{noisy_linear_forward.1} parent=1 // pred_check_branch
      %53 = sbr.rel (0) target = $region33
    $region32: #{noisy_linear_forward.1} parent=1 // pred_region
      %55 = dma.done [#allocation7], 1024
    $region33: #{noisy_linear_forward.1} parent=1 // pred_fallthru
      _
    %p56 = scmp.eq.s32.totalorder 0, 0
    // Predicated region
    $region34: #{noisy_linear_forward.1} parent=1 // pred_check
      %p57 = pneg %p56
    $region35: #{noisy_linear_forward.1} parent=1 // pred_check_branch
      %59 = sbr.rel (%p57) target = $region37
    $region36: #{noisy_linear_forward.1} parent=1 // pred_region
      %60 = vst [vmem:[#allocation8] sm:$0xff] 0.0
      %61 = vst [vmem:[#allocation2] sm:$0xff] 0.0
    $region37: #{noisy_linear_forward.1} parent=1 // pred_fallthru
      _
    %v62 = vld [vmem:[%s0] sm:$0xff]
    %v63 = vld [vmem:[#allocation8] sm:$0xff]
    %v64 = vpack.c.bf16 %v62, %v62
    %v65 = vld [vmem:[#allocation3] sm:$0xf]
    %v66 = vld [vmem:[#allocation3 + $0x4] sm:$0xf]
    %v67 = vld [vmem:[#allocation3 + $0x8] sm:$0xf]
    %v68 = vld [vmem:[#allocation3 + $0xc] sm:$0xf]
    %v69 = vld [vmem:[#allocation3 + $0x10] sm:$0xf]
    %v70 = vld [vmem:[#allocation3 + $0x14] sm:$0xf]
    %v71 = vld [vmem:[#allocation3 + $0x18] sm:$0xf]
    %v72 = vld [vmem:[#allocation3 + $0x1c] sm:$0xf]
    %v73 = vld [vmem:[#allocation3 + $0x20] sm:$0xf]
    %v74 = vld [vmem:[#allocation3 + $0x24] sm:$0xf]
    %v75 = vld [vmem:[#allocation3 + $0x28] sm:$0xf]
    %v76 = vld [vmem:[#allocation3 + $0x2c] sm:$0xf]
    %v77 = vld [vmem:[#allocation3 + $0x30] sm:$0xf]
    %v78 = vld [vmem:[#allocation3 + $0x34] sm:$0xf]
    %v79 = vld [vmem:[#allocation3 + $0x38] sm:$0xf]
    %v80 = vld [vmem:[#allocation3 + $0x3c] sm:$0xf]
    %v97 = vunpack.c.l.b16 %v65
    %v98 = vunpack.c.l.b16 %v66
    %v99 = vunpack.c.l.b16 %v67
    %v100 = vunpack.c.l.b16 %v68
    %v101 = vunpack.c.l.b16 %v69
    %v102 = vunpack.c.l.b16 %v70
    %v103 = vunpack.c.l.b16 %v71
    %v104 = vunpack.c.l.b16 %v72
    %v105 = vunpack.c.l.b16 %v73
    %v106 = vunpack.c.l.b16 %v74
    %v107 = vunpack.c.l.b16 %v75
    %v108 = vunpack.c.l.b16 %v76
    %v109 = vunpack.c.l.b16 %v77
    %v110 = vunpack.c.l.b16 %v78
    %v111 = vunpack.c.l.b16 %v79
    %v112 = vunpack.c.l.b16 %v80
    %v113 = vpack.c.b16 %v98, %v97
    %v114 = vpack.c.b16 %v100, %v99
    %v115 = vpack.c.b16 %v102, %v101
    %v116 = vpack.c.b16 %v104, %v103
    %v117 = vpack.c.b16 %v106, %v105
    %v118 = vpack.c.b16 %v108, %v107
    %v119 = vpack.c.b16 %v110, %v109
    %v120 = vpack.c.b16 %v112, %v111
    %129 = vmatpush.bf16.msra.mxu0 %v120
    %130 = vmatpush.bf16.msra.mxu0 %v119
    %131 = vmatpush.bf16.msra.mxu0 %v118
    %132 = vmatpush.bf16.msra.mxu0 %v117
    %133 = vmatpush.bf16.msra.mxu0 %v116
    %134 = vmatpush.bf16.msra.mxu0 %v115
    %135 = vmatpush.bf16.msra.mxu0 %v114
    %136 = vmatpush.bf16.msra.mxu0 %v113
    %137 = vmatmul.bf16.gmra.mxu0 %v64
    %v138 = vpop.f32.mrf.mxu0
    %v139 = vadd.f32 0.0, %v138
    %v140 = vpop.f32.mrf.mxu0
    %141 = vdwg.mxu0
    %v142 = vadd.f32 %v63, %v139
    %143 = vst [vmem:[#allocation8] sm:$0xff] %v142
    %v144 = vld [vmem:[%s3] sm:$0x1]
    %v146 = vperm.slane %v144, 0
    %v148 = vmul.f32 %v62, %v146
    %v149 = vld [vmem:[#allocation2] sm:$0xff]
    %v150 = vpack.c.bf16 %v148, %v148
    %v151 = vld [vmem:[#allocation6] sm:$0xf]
    %v152 = vld [vmem:[#allocation6 + $0x4] sm:$0xf]
    %v153 = vld [vmem:[#allocation6 + $0x8] sm:$0xf]
    %v154 = vld [vmem:[#allocation6 + $0xc] sm:$0xf]
    %v155 = vld [vmem:[#allocation6 + $0x10] sm:$0xf]
    %v156 = vld [vmem:[#allocation6 + $0x14] sm:$0xf]
    %v157 = vld [vmem:[#allocation6 + $0x18] sm:$0xf]
    %v158 = vld [vmem:[#allocation6 + $0x1c] sm:$0xf]
    %v159 = vld [vmem:[#allocation6 + $0x20] sm:$0xf]
    %v160 = vld [vmem:[#allocation6 + $0x24] sm:$0xf]
    %v161 = vld [vmem:[#allocation6 + $0x28] sm:$0xf]
    %v162 = vld [vmem:[#allocation6 + $0x2c] sm:$0xf]
    %v163 = vld [vmem:[#allocation6 + $0x30] sm:$0xf]
    %v164 = vld [vmem:[#allocation6 + $0x34] sm:$0xf]
    %v165 = vld [vmem:[#allocation6 + $0x38] sm:$0xf]
    %v166 = vld [vmem:[#allocation6 + $0x3c] sm:$0xf]
    %v183 = vunpack.c.l.b16 %v151
    %v184 = vunpack.c.l.b16 %v152
    %v185 = vunpack.c.l.b16 %v153
    %v186 = vunpack.c.l.b16 %v154
    %v187 = vunpack.c.l.b16 %v155
    %v188 = vunpack.c.l.b16 %v156
    %v189 = vunpack.c.l.b16 %v157
    %v190 = vunpack.c.l.b16 %v158
    %v191 = vunpack.c.l.b16 %v159
    %v192 = vunpack.c.l.b16 %v160
    %v193 = vunpack.c.l.b16 %v161
    %v194 = vunpack.c.l.b16 %v162
    %v195 = vunpack.c.l.b16 %v163
    %v196 = vunpack.c.l.b16 %v164
    %v197 = vunpack.c.l.b16 %v165
    %v198 = vunpack.c.l.b16 %v166
    %v199 = vpack.c.b16 %v184, %v183
    %v200 = vpack.c.b16 %v186, %v185
    %v201 = vpack.c.b16 %v188, %v187
    %v202 = vpack.c.b16 %v190, %v189
    %v203 = vpack.c.b16 %v192, %v191
    %v204 = vpack.c.b16 %v194, %v193
    %v205 = vpack.c.b16 %v196, %v195
    %v206 = vpack.c.b16 %v198, %v197
    %215 = vmatpush.bf16.msra.mxu0 %v206
    %216 = vmatpush.bf16.msra.mxu0 %v205
    %217 = vmatpush.bf16.msra.mxu0 %v204
    %218 = vmatpush.bf16.msra.mxu0 %v203
    %219 = vmatpush.bf16.msra.mxu0 %v202
    %220 = vmatpush.bf16.msra.mxu0 %v201
    %221 = vmatpush.bf16.msra.mxu0 %v200
    %222 = vmatpush.bf16.msra.mxu0 %v199
    %223 = vmatmul.bf16.gmra.mxu0 %v150
    %v224 = vpop.f32.mrf.mxu0
    %v225 = vadd.f32 0.0, %v224
    %v226 = vpop.f32.mrf.mxu0
    %227 = vdwg.mxu0
    %v228 = vadd.f32 %v149, %v225
    %229 = vst [vmem:[#allocation2] sm:$0xff] %v228
    // Predicated region
    $region38: #{noisy_linear_forward.1} parent=1 // pred_check
      %p230 = pneg %p56
    $region39: #{noisy_linear_forward.1} parent=1 // pred_check_branch
      %232 = sbr.rel (%p230) target = $region41
    $region40: #{noisy_linear_forward.1} parent=1 // pred_region
      %v233 = vld [vmem:[%s4] sm:$0x1]
      %v234 = vld [vmem:[%s5] sm:$0x1]
      %v235 = vld [vmem:[#allocation8] sm:$0xff]
      %v236 = vld [vmem:[#allocation2] sm:$0xff]
      %v238 = vperm.slane %v233, 0
      %v240 = vmul.f32 %v238, %v236
      %v241 = vadd.f32 %v235, %v240
      %v243 = vperm.slane %v234, 0
      %v245 = vadd.f32 %v241, %v243
      %246 = vst [vmem:[#allocation8] sm:$0xff] %v245
    $region41: #{noisy_linear_forward.1} parent=1 // pred_fallthru
      _
    // Predicated region
    $region42: #{noisy_linear_forward.1} parent=1 // pred_check
      _
    $region43: #{noisy_linear_forward.1} parent=1 // pred_check_branch
      %248 = sbr.rel (0) target = $region45
    $region44: #{noisy_linear_forward.1} parent=1 // pred_region
      %250 = vsyncadd [#allocation5], 0
      %s252 = sshll.u32 [#allocation8], 4
      %s253 = int_to_ptr.vmem [resolvable:$true] %s252
      %s254 = sshll.u32 %s6, 4
      %s255 = int_to_ptr.hbm [resolvable:$true] %s254
      %257 = dma.vmem_to_hbm [thread:$0]  %s253, 128, %s255, [#allocation5]
    $region45: #{noisy_linear_forward.1} parent=1 // pred_fallthru
      _
    // Predicated region
    $region46: #{noisy_linear_forward.1} parent=1 // pred_check
      _
    $region47: #{noisy_linear_forward.1} parent=1 // pred_check_branch
      %259 = sbr.rel (0) target = $region49
    $region48: #{noisy_linear_forward.1} parent=1 // pred_region
      %261 = dma.done [#allocation5], 128
    $region49: #{noisy_linear_forward.1} parent=1 // pred_fallthru
      _
    %262 = vsyncpa [#allocation4], 1
    %263 = vsyncpa [#allocation7], 1
    %264 = vsyncpa [#allocation5], 1

</llo_original>
